<compile_context>
chip_gen: v7x
topology: tpu7x:2x2x1
jax: 0.10.0
libtpu: 0.0.40
codegen_flags: <defaults>
</compile_context>

<pallas_src>
import functools

import numpy as np

import jax
import jax.numpy as jnp
from jax import lax
from jax.experimental import pallas as pl
from jax.experimental.pallas import tpu as pltpu


def _conv3x3_kernel(x_ref, w_ref, b_ref, m_ref, o_ref, *, B, Cin, Cin_pad,
                    H, W, relufactor, do_relu, compute_dtype):
    """One grid step == B images of the batch.

    x_ref : (B, Cin, H*W)       flattened NCHW activations (H*W on lanes)
    w_ref : (Cout, 9*Cin_pad)   flattened taps in compute_dtype,
                                column = (kh*3+kw)*Cin_pad + c
    b_ref : (Cout, 1)           bias (f32)
    m_ref : (9, H*W)            0/1 zero-padding masks per tap (f32)
    o_ref : (B, Cout, H*W)      output, directly NCHW-flat (lane-dense)
    """
    HW = H * W
    w = w_ref[...]                     # (Cout, 9*Cin_pad), already compute_dtype
    masks = m_ref[...]                 # (9, HW) f32, shared by all B images
    bias = b_ref[...]                  # (Cout, 1)  f32

    for b in range(B):                 # static loop: B images per grid step
        x = x_ref[b]                   # (Cin, HW) f32
        if Cin_pad > Cin:
            # 8-sublane-align every per-tap slab: pad channels with zero rows
            # (matching weight columns are zero-padded in the wrapper).
            x = jnp.concatenate(
                [x, jnp.zeros((Cin_pad - Cin, HW), dtype=x.dtype)], axis=0)

        # Build the im2col patch (9*Cin_pad, HW) in-register: each 3x3 tap is
        # a lane-roll of the flattened image, with out-of-image positions
        # zeroed by the precomputed mask (this *is* the padding=1 zero pad).
        slabs = []
        for kh in range(3):
            dy = kh - 1
            for kw in range(3):
                dx = kw - 1
                t = kh * 3 + kw
                offset = dy * W + dx   # want shifted[p] = x[p + offset]
                if offset == 0:
                    shifted = x
                else:
                    shifted = pltpu.roll(x, shift=(-offset) % HW, axis=1)
                    shifted = shifted * masks[t:t + 1, :]     # (1, HW) bcast
                slabs.append(shifted)
        patch = jnp.concatenate(slabs, axis=0)                # (9*Cin_pad, HW)

        # Single MXU matmul, N = H*W on the lane axis (fills MXU columns).
        # Operands in compute_dtype (bf16 -> native MXU path), f32 accumulate.
        acc = jnp.dot(w, patch.astype(compute_dtype),
                      preferred_element_type=jnp.float32)     # (Cout, HW) f32
        acc = acc + bias                                      # (Cout, 1) bcast

        if do_relu:
            if relufactor == 0:
                acc = jnp.maximum(acc, 0.0)
            else:
                # LeakyReLU for 0 <= relufactor < 1: one VPU max, no select.
                acc = jnp.maximum(acc, acc * relufactor)

        o_ref[b] = acc.astype(o_ref.dtype)


def _padding_masks(H, W):
    """(9, H*W) float32 0/1 masks implementing zero padding for each 3x3 tap."""
    yy, xx = np.meshgrid(np.arange(H), np.arange(W), indexing="ij")
    masks = []
    for kh in range(3):
        dy = kh - 1
        for kw in range(3):
            dx = kw - 1
            valid = ((yy + dy >= 0) & (yy + dy < H) &
                     (xx + dx >= 0) & (xx + dx < W))
            masks.append(valid.reshape(-1))
    return jnp.asarray(np.stack(masks).astype(np.float32))


def _pick_images_per_step(N, max_images=8):
    """Largest divisor of N that is <= max_images while leaving >= 2 grid
    steps (so both v7x TensorCores get work when N >= 2)."""
    best = 1
    for b in range(1, min(N, max_images) + 1):
        if N % b == 0 and (N // b >= 2 or N == 1):
            best = b
    return best


def dilate_conv2d_forward(x_nchw, weight_oihw, bias, *, relufactor=0.0,
                          do_relu=True, compute_dtype=jnp.bfloat16,
                          images_per_step=None):
    """Forward pass matching the PyTorch module (do_norm=False, drop_rate=0).

    x_nchw      : (N, Cin, H, W)    float32
    weight_oihw : (Cout, Cin, 3, 3) float32 (PyTorch Conv2d layout)
    bias        : (Cout,)           float32
    returns     : (N, Cout, H, W)   float32
    """
    N, Cin, H, W = x_nchw.shape
    Cout, _, KH, KW = weight_oihw.shape
    assert (KH, KW) == (3, 3), "kernel implements k_size=3, stride=1, padding=1"
    HW = H * W   # multiple of 128 here -> unmasked lane-dense stores

    B = images_per_step if images_per_step is not None else _pick_images_per_step(N)
    assert N % B == 0, "images_per_step must divide the batch"

    Cin_pad = ((Cin + 7) // 8) * 8        # 8-sublane-aligned per-tap slabs

    # Free contiguous reshape (no transpose, no pad, no extra HBM pass).
    x_flat = x_nchw.reshape(N, Cin, HW)
    # Tiny weight tensor: flatten to one lane/sublane-friendly 2-D tile,
    # column index = (kh*3+kw)*Cin_pad + c (zero columns for padded channels).
    # Cast hoisted here: shipped to the kernel in compute_dtype once.
    w_k = jnp.transpose(weight_oihw, (0, 2, 3, 1))            # (Cout,3,3,Cin)
    if Cin_pad > Cin:
        w_k = jnp.pad(w_k, ((0, 0), (0, 0), (0, 0), (0, Cin_pad - Cin)))
    w_flat = w_k.reshape(Cout, 9 * Cin_pad).astype(compute_dtype)
    b2d = bias.reshape(Cout, 1).astype(jnp.float32)
    masks = _padding_masks(H, W)                              # (9, HW) consts

    kernel = functools.partial(
        _conv3x3_kernel, B=B, Cin=Cin, Cin_pad=Cin_pad, H=H, W=W,
        relufactor=relufactor, do_relu=do_relu, compute_dtype=compute_dtype)

    out_flat = pl.pallas_call(
        kernel,
        out_shape=jax.ShapeDtypeStruct((N, Cout, HW), x_nchw.dtype),
        grid_spec=pltpu.PrefetchScalarGridSpec(
            num_scalar_prefetch=0,
            grid=(N // B,),
            in_specs=[
                pl.BlockSpec((B, Cin, HW), lambda n: (n, 0, 0)),
                pl.BlockSpec((Cout, 9 * Cin_pad), lambda n: (0, 0)),
                pl.BlockSpec((Cout, 1), lambda n: (0, 0)),
                pl.BlockSpec((9, HW), lambda n: (0, 0)),
            ],
            out_specs=pl.BlockSpec((B, Cout, HW), lambda n: (n, 0, 0)),
        ),
        compiler_params=pltpu.CompilerParams(
            dimension_semantics=("parallel",),
            vmem_limit_bytes=32 * 1024 * 1024),
    )(x_flat, w_flat, b2d, masks)

    return out_flat.reshape(N, Cout, H, W)         # free reshape back to NCHW


def _reference_forward(x_nchw, weight_oihw, bias, relufactor=0.0,
                       do_relu=True):
    """Pure-JAX reference (lax.conv) for correctness checking."""
    y = lax.conv_general_dilated(
        x_nchw, weight_oihw,
        window_strides=(1, 1), padding=((1, 1), (1, 1)),
        dimension_numbers=("NCHW", "OIHW", "NCHW"))
    y = y + bias.reshape(1, -1, 1, 1)
    if not do_relu:
        return y
    if relufactor == 0:
        return jnp.maximum(y, 0.0)
    return jnp.where(y >= 0.0, y, y * relufactor)


if __name__ == "__main__":
    key = jax.random.PRNGKey(0)
    k_x, k_w, k_b = jax.random.split(key, 3)

    N, Cin, H, W = 2, 4, 16, 16
    Cout, K = 8, 3

    x = jax.random.normal(k_x, (N, Cin, H, W), dtype=jnp.float32)
    # Deterministic init mimicking PyTorch Conv2d default (+/- 1/sqrt(fan_in)).
    fan_in = Cin * K * K
    bound = 1.0 / float(np.sqrt(fan_in))
    weight = jax.random.uniform(k_w, (Cout, Cin, K, K),
                                minval=-bound, maxval=bound, dtype=jnp.float32)
    bias = jax.random.uniform(k_b, (Cout,),
                              minval=-bound, maxval=bound, dtype=jnp.float32)

    # f32 compute path — exact checks against lax.conv reference.
    out = jax.block_until_ready(dilate_conv2d_forward(
        x, weight, bias, relufactor=0.0, compute_dtype=jnp.float32))
    ref = _reference_forward(x, weight, bias, relufactor=0.0)
    assert out.shape == (N, Cout, H, W)
    assert jnp.allclose(out, ref, atol=1e-4, rtol=1e-4), "f32 ReLU mismatch"

    out_l = jax.block_until_ready(dilate_conv2d_forward(
        x, weight, bias, relufactor=0.2, compute_dtype=jnp.float32))
    ref_l = _reference_forward(x, weight, bias, relufactor=0.2)
    assert jnp.allclose(out_l, ref_l, atol=1e-4, rtol=1e-4), "f32 LeakyReLU mismatch"

    # Default bf16-MXU path (f32 accumulation) — loose tolerance vs f32 ref.
    out_bf = jax.block_until_ready(dilate_conv2d_forward(
        x, weight, bias, relufactor=0.0))
    assert out_bf.shape == (N, Cout, H, W)
    assert jnp.allclose(out_bf, ref, atol=5e-2, rtol=5e-2), "bf16 path mismatch"

    print("KERNEL_OK")
</pallas_src>

<mosaic_0001>
module attributes {stable_mosaic.version = 11 : i64} {
  func.func @_conv3x3_kernel(%arg0: i32, %arg1: memref<1x4x256xf32, #tpu.memory_space<vmem>>, %arg2: memref<8x72xf32, #tpu.memory_space<vmem>>, %arg3: memref<8x1xf32, #tpu.memory_space<vmem>>, %arg4: memref<9x256xf32, #tpu.memory_space<vmem>>, %arg5: memref<1x8x256xf32, #tpu.memory_space<vmem>>) attributes {dimension_semantics = [#tpu.dimension_semantics<parallel>], iteration_bounds = array<i64: 2>, scalar_prefetch = 0 : i64, scratch_operands = 0 : i64, tpu.core_type = #tpu.core_type<tc>, window_params = [{transform_indices = @transform_0, window_bounds = array<i64: 1, 4, 256>}, {pipeline_mode = #tpu.pipeline_mode<synchronous>, transform_indices = @transform_1, window_bounds = array<i64: 8, 72>}, {pipeline_mode = #tpu.pipeline_mode<synchronous>, transform_indices = @transform_2, window_bounds = array<i64: 8, 1>}, {pipeline_mode = #tpu.pipeline_mode<synchronous>, transform_indices = @transform_3, window_bounds = array<i64: 9, 256>}, {transform_indices = @transform_4, window_bounds = array<i64: 1, 8, 256>}]} {
    %c0 = arith.constant 0 : index
    %c0_0 = arith.constant 0 : index
    %0 = vector.load %arg2[%c0, %c0_0] : memref<8x72xf32, #tpu.memory_space<vmem>>, vector<8x72xf32>
    %c0_1 = arith.constant 0 : index
    %c0_2 = arith.constant 0 : index
    %1 = vector.load %arg4[%c0_1, %c0_2] : memref<9x256xf32, #tpu.memory_space<vmem>>, vector<9x256xf32>
    %c0_3 = arith.constant 0 : index
    %c0_4 = arith.constant 0 : index
    %2 = vector.load %arg3[%c0_3, %c0_4] : memref<8x1xf32, #tpu.memory_space<vmem>>, vector<8x1xf32>
    %c0_5 = arith.constant 0 : index
    %c0_6 = arith.constant 0 : index
    %c0_7 = arith.constant 0 : index
    %3 = vector.load %arg1[%c0_5, %c0_6, %c0_7] : memref<1x4x256xf32, #tpu.memory_space<vmem>>, vector<1x4x256xf32>
    %4 = vector.shape_cast %3 : vector<1x4x256xf32> to vector<4x256xf32>
    %cst = arith.constant 0.000000e+00 : f32
    %5 = vector.broadcast %cst : f32 to vector<4x256xf32>
    %6 = tpu.concatenate %4, %5 in 0 : vector<4x256xf32>, vector<4x256xf32> -> vector<8x256xf32>
    %c17_i32 = arith.constant 17 : i32
    %7 = tpu.dynamic_rotate %6 by %c17_i32 dim 1 : vector<8x256xf32>, i32 -> vector<8x256xf32>
    %8 = vector.extract_strided_slice %1 {offsets = [0, 0], sizes = [1, 256], strides = [1, 1]} : vector<9x256xf32> to vector<1x256xf32>
    %9 = vector.broadcast %8 : vector<1x256xf32> to vector<8x256xf32>
    %10 = arith.mulf %7, %9 : vector<8x256xf32>
    %c16_i32 = arith.constant 16 : i32
    %11 = tpu.dynamic_rotate %6 by %c16_i32 dim 1 : vector<8x256xf32>, i32 -> vector<8x256xf32>
    %12 = vector.extract_strided_slice %1 {offsets = [1, 0], sizes = [1, 256], strides = [1, 1]} : vector<9x256xf32> to vector<1x256xf32>
    %13 = vector.broadcast %12 : vector<1x256xf32> to vector<8x256xf32>
    %14 = arith.mulf %11, %13 : vector<8x256xf32>
    %c15_i32 = arith.constant 15 : i32
    %15 = tpu.dynamic_rotate %6 by %c15_i32 dim 1 : vector<8x256xf32>, i32 -> vector<8x256xf32>
    %16 = vector.extract_strided_slice %1 {offsets = [2, 0], sizes = [1, 256], strides = [1, 1]} : vector<9x256xf32> to vector<1x256xf32>
    %17 = vector.broadcast %16 : vector<1x256xf32> to vector<8x256xf32>
    %18 = arith.mulf %15, %17 : vector<8x256xf32>
    %c1_i32 = arith.constant 1 : i32
    %19 = tpu.dynamic_rotate %6 by %c1_i32 dim 1 : vector<8x256xf32>, i32 -> vector<8x256xf32>
    %20 = vector.extract_strided_slice %1 {offsets = [3, 0], sizes = [1, 256], strides = [1, 1]} : vector<9x256xf32> to vector<1x256xf32>
    %21 = vector.broadcast %20 : vector<1x256xf32> to vector<8x256xf32>
    %22 = arith.mulf %19, %21 : vector<8x256xf32>
    %c255_i32 = arith.constant 255 : i32
    %23 = tpu.dynamic_rotate %6 by %c255_i32 dim 1 : vector<8x256xf32>, i32 -> vector<8x256xf32>
    %24 = vector.extract_strided_slice %1 {offsets = [5, 0], sizes = [1, 256], strides = [1, 1]} : vector<9x256xf32> to vector<1x256xf32>
    %25 = vector.broadcast %24 : vector<1x256xf32> to vector<8x256xf32>
    %26 = arith.mulf %23, %25 : vector<8x256xf32>
    %c241_i32 = arith.constant 241 : i32
    %27 = tpu.dynamic_rotate %6 by %c241_i32 dim 1 : vector<8x256xf32>, i32 -> vector<8x256xf32>
    %28 = vector.extract_strided_slice %1 {offsets = [6, 0], sizes = [1, 256], strides = [1, 1]} : vector<9x256xf32> to vector<1x256xf32>
    %29 = vector.broadcast %28 : vector<1x256xf32> to vector<8x256xf32>
    %30 = arith.mulf %27, %29 : vector<8x256xf32>
    %c240_i32 = arith.constant 240 : i32
    %31 = tpu.dynamic_rotate %6 by %c240_i32 dim 1 : vector<8x256xf32>, i32 -> vector<8x256xf32>
    %32 = vector.extract_strided_slice %1 {offsets = [7, 0], sizes = [1, 256], strides = [1, 1]} : vector<9x256xf32> to vector<1x256xf32>
    %33 = vector.broadcast %32 : vector<1x256xf32> to vector<8x256xf32>
    %34 = arith.mulf %31, %33 : vector<8x256xf32>
    %c239_i32 = arith.constant 239 : i32
    %35 = tpu.dynamic_rotate %6 by %c239_i32 dim 1 : vector<8x256xf32>, i32 -> vector<8x256xf32>
    %36 = vector.extract_strided_slice %1 {offsets = [8, 0], sizes = [1, 256], strides = [1, 1]} : vector<9x256xf32> to vector<1x256xf32>
    %37 = vector.broadcast %36 : vector<1x256xf32> to vector<8x256xf32>
    %38 = arith.mulf %35, %37 : vector<8x256xf32>
    %39 = tpu.concatenate %10, %14, %18, %22, %6, %26, %30, %34, %38 in 0 : vector<8x256xf32>, vector<8x256xf32>, vector<8x256xf32>, vector<8x256xf32>, vector<8x256xf32>, vector<8x256xf32>, vector<8x256xf32>, vector<8x256xf32>, vector<8x256xf32> -> vector<72x256xf32>
    %cst_8 = arith.constant dense<0.000000e+00> : vector<8x256xf32>
    %40 = tpu.matmul %0, %39, %cst_8 {dimension_numbers = #tpu.dot_dimension_numbers<[1], [0], [0], [1], [0, 0, 1, 1], [], []>} : vector<8x72xf32>, vector<72x256xf32>, vector<8x256xf32> -> vector<8x256xf32>
    %41 = vector.broadcast %2 : vector<8x1xf32> to vector<8x256xf32>
    %42 = arith.addf %40, %41 : vector<8x256xf32>
    %cst_9 = arith.constant 0.000000e+00 : f32
    %43 = vector.broadcast %cst_9 : f32 to vector<8x256xf32>
    %44 = arith.maximumf %42, %43 : vector<8x256xf32>
    %c0_10 = arith.constant 0 : index
    %c0_11 = arith.constant 0 : index
    %c0_12 = arith.constant 0 : index
    %45 = vector.load %arg5[%c0_10, %c0_11, %c0_12] : memref<1x8x256xf32, #tpu.memory_space<vmem>>, vector<1x8x256xf32>
    %46 = vector.shape_cast %45 : vector<1x8x256xf32> to vector<8x256xf32>
    %47 = vector.shape_cast %44 : vector<8x256xf32> to vector<1x8x256xf32>
    tpu.vector_store %arg5[%c0_10, %c0_11, %c0_12], %47 {strides = array<i32>} : memref<1x8x256xf32, #tpu.memory_space<vmem>>, vector<1x8x256xf32>,
    return
  }
  func.func @transform_0(%arg0: i32) -> (i32, i32, i32) {
    %c0_i32 = arith.constant 0 : i32
    %c0_i32_0 = arith.constant 0 : i32
    %c0_i32_1 = arith.constant 0 : i32
    return %arg0, %c0_i32, %c0_i32_0 : i32, i32, i32
  }
  func.func @transform_1(%arg0: i32) -> (i32, i32) {
    %c0_i32 = arith.constant 0 : i32
    %c0_i32_0 = arith.constant 0 : i32
    %c0_i32_1 = arith.constant 0 : i32
    return %c0_i32, %c0_i32_0 : i32, i32
  }
  func.func @transform_2(%arg0: i32) -> (i32, i32) {
    %c0_i32 = arith.constant 0 : i32
    %c0_i32_0 = arith.constant 0 : i32
    %c0_i32_1 = arith.constant 0 : i32
    return %c0_i32, %c0_i32_0 : i32, i32
  }
  func.func @transform_3(%arg0: i32) -> (i32, i32) {
    %c0_i32 = arith.constant 0 : i32
    %c0_i32_0 = arith.constant 0 : i32
    %c0_i32_1 = arith.constant 0 : i32
    return %c0_i32, %c0_i32_0 : i32, i32
  }
  func.func @transform_4(%arg0: i32) -> (i32, i32, i32) {
    %c0_i32 = arith.constant 0 : i32
    %c0_i32_0 = arith.constant 0 : i32
    %c0_i32_1 = arith.constant 0 : i32
    return %arg0, %c0_i32, %c0_i32_0 : i32, i32, i32
  }
}

</mosaic_0001>

<llo_original>
// kernel: tpu_custom_call.1
$region0: #{tpu_custom_call.1}
  #allocation0 [shape = 'u32[]', space=smem, size = 0x4, offset = 0x4, fixed_abs, tag = 'smem constant byte address 0x4 - core index']
  #allocation1 [shape = 'u32[144,128]{1,0:T(1,128)}', space=vmem, size = 0x12000, scoped, tag = 'internal scratch']
  %s0 = inlined_call_operand.hbm [shape: f32[2,4,256], index: 0, kind: input, shape index: {}]
  %s1 = inlined_call_operand.vmem [shape: f32[8,72], index: 1, kind: input, shape index: {}]
  %s2 = inlined_call_operand.vmem [shape: f32[8,1], index: 2, kind: input, shape index: {}]
  %s3 = inlined_call_operand.hbm [shape: f32[9,256], index: 3, kind: input, shape index: {}]
  %s4 = inlined_call_operand.hbm [shape: f32[2,8,256], index: 4, kind: output, shape index: {}]
  %s5 = sld [smem:[#allocation0]]
  $region57: #{tpu_custom_call.1} parent=0
    _
  %s7 = ssub.s32 1, %s5
  %s8 = scalar_select 0, %s7, %s5
  $region1: #{tpu_custom_call.1} parent=0
    #allocation2 [shape = 'u8[8192]{0}', space=vmem, size = 0x2000, scoped, tag = 'input window, operand 0']
    #allocation3 [shape = 's32[2]{0}', space=sflag, size = 0x8, scoped, tag = 'scoped memory for tpu_custom_call.1']
    #allocation4 [shape = 's32[2]{0}', space=sflag, size = 0x8, scoped, tag = 'scoped memory for tpu_custom_call.1']
    #allocation5 [shape = 'u8[16384]{0}', space=vmem, size = 0x4000, scoped, tag = 'input window, operand 3, single buffered']
    #allocation6 [shape = 's32[1]{0}', space=sflag, size = 0x4, scoped, tag = 'scoped memory for tpu_custom_call.1']
    #allocation7 [shape = 'u8[16384]{0}', space=vmem, size = 0x4000, scoped, tag = 'output window, operand 0']
    %9 = vsyncpa [#allocation3], 0
    %s10 = scalar_lea.sflag [#allocation3], 1
    %11 = vsyncpa %s10, 0
    %12 = vsyncpa [#allocation6], 0
    %13 = vsyncpa [#allocation4], 0
    %s14 = scalar_lea.sflag [#allocation4], 1
    %15 = vsyncpa %s14, 0
    loop: start=0, step=1, limit=4
    $region2: #{tpu_custom_call.1} parent=1 // loop_pre_header
      _
    $region3: #{tpu_custom_call.1} parent=1 // loop_header
      %s17 = sphi 0, %s21
      %p18 = scmp.ge.s32.totalorder %s17, 4
      %s27 = sphi 0, %s29
      %s30 = sphi 0, %s27
      %s31 = sphi 0, %s30
      %s47 = sphi 0, %s31
      %s51 = sphi 0, %s51
      %s53 = sphi 0, %s51
      %s54 = sphi 0, %s53
      %s68 = sphi 0, %s54
      %s72 = sphi 0, %s72
      %s74 = sphi 0, %s72
      %s75 = sphi 0, %s74
      %s89 = sphi 0, %s75
      %s93 = sphi 0, %s93
      %s95 = sphi 0, %s93
      %s96 = sphi 0, %s95
      %s110 = sphi 0, %s96
      %s116 = sphi 0, %s118
      %s119 = sphi 0, %s116
      %s120 = sphi 0, %s119
      %s136 = sphi 0, %s120
    $region4: #{tpu_custom_call.1} parent=1 // loop_header_branch
      %20 = sbr.rel (%p18) target = $region8
    $region5: #{tpu_custom_call.1} parent=1 // loop_body
      %s22 = ssub.s32 %s17, 1
      %s23 = ssub.s32 %s17, 2
      %s24 = sadd.s32 %s17, 1
      %s25 = ssub.s32 %s17, %s24
      %p26 = scmp.eq.s32.totalorder %s25, 0
      %s28 = sadd.s32 %s27, 1
      %s29 = scalar_select %p26, %s27, %s28
      %p32 = pneg %p26
      %p33 = scmp.eq.s32.totalorder %s17, 1
      %p34 = por %p32, %p33
      %p35 = scmp.ne.s32.totalorder %s27, %s30
      %p36 = scmp.eq.s32.totalorder %s17, 0
      %p37 = por %p35, %p36
      %p38 = scmp.ne.s32.totalorder %s27, %s30
      %p39 = scmp.eq.s32.totalorder %s22, 1
      %p40 = por %p38, %p39
      %p41 = scmp.ne.s32.totalorder %s30, %s31
      %p42 = scmp.eq.s32.totalorder %s22, 0
      %p43 = por %p41, %p42
      %p44 = scmp.ne.s32.totalorder %s30, %s31
      %p45 = scmp.eq.s32.totalorder %s23, 1
      %p46 = por %p44, %p45
      %p48 = scmp.ne.s32.totalorder %s31, %s47
      %p49 = scmp.eq.s32.totalorder %s23, 0
      %p50 = por %p48, %p49
      %s52 = sadd.s32 %s51, 1
      %p55 = scmp.eq.s32.totalorder %s17, 1
      %p56 = scmp.ne.s32.totalorder %s51, %s53
      %p57 = scmp.eq.s32.totalorder %s17, 0
      %p58 = por %p56, %p57
      %p59 = scmp.ne.s32.totalorder %s51, %s53
      %p60 = scmp.eq.s32.totalorder %s22, 1
      %p61 = por %p59, %p60
      %p62 = scmp.ne.s32.totalorder %s53, %s54
      %p63 = scmp.eq.s32.totalorder %s22, 0
      %p64 = por %p62, %p63
      %p65 = scmp.ne.s32.totalorder %s53, %s54
      %p66 = scmp.eq.s32.totalorder %s23, 1
      %p67 = por %p65, %p66
      %p69 = scmp.ne.s32.totalorder %s54, %s68
      %p70 = scmp.eq.s32.totalorder %s23, 0
      %p71 = por %p69, %p70
      %s73 = sadd.s32 %s72, 1
      %p76 = scmp.eq.s32.totalorder %s17, 1
      %p77 = scmp.ne.s32.totalorder %s72, %s74
      %p78 = scmp.eq.s32.totalorder %s17, 0
      %p79 = por %p77, %p78
      %p80 = scmp.ne.s32.totalorder %s72, %s74
      %p81 = scmp.eq.s32.totalorder %s22, 1
      %p82 = por %p80, %p81
      %p83 = scmp.ne.s32.totalorder %s74, %s75
      %p84 = scmp.eq.s32.totalorder %s22, 0
      %p85 = por %p83, %p84
      %p86 = scmp.ne.s32.totalorder %s74, %s75
      %p87 = scmp.eq.s32.totalorder %s23, 1
      %p88 = por %p86, %p87
      %p90 = scmp.ne.s32.totalorder %s75, %s89
      %p91 = scmp.eq.s32.totalorder %s23, 0
      %p92 = por %p90, %p91
      %s94 = sadd.s32 %s93, 1
      %p97 = scmp.eq.s32.totalorder %s17, 1
      %p98 = scmp.ne.s32.totalorder %s93, %s95
      %p99 = scmp.eq.s32.totalorder %s17, 0
      %p100 = por %p98, %p99
      %p101 = scmp.ne.s32.totalorder %s93, %s95
      %p102 = scmp.eq.s32.totalorder %s22, 1
      %p103 = por %p101, %p102
      %p104 = scmp.ne.s32.totalorder %s95, %s96
      %p105 = scmp.eq.s32.totalorder %s22, 0
      %p106 = por %p104, %p105
      %p107 = scmp.ne.s32.totalorder %s95, %s96
      %p108 = scmp.eq.s32.totalorder %s23, 1
      %p109 = por %p107, %p108
      %p111 = scmp.ne.s32.totalorder %s96, %s110
      %p112 = scmp.eq.s32.totalorder %s23, 0
      %p113 = por %p111, %p112
      %s114 = ssub.s32 %s17, %s24
      %p115 = scmp.eq.s32.totalorder %s114, 0
      %s117 = sadd.s32 %s116, 1
      %s118 = scalar_select %p115, %s116, %s117
      %p121 = pneg %p115
      %p122 = scmp.eq.s32.totalorder %s17, 1
      %p123 = por %p121, %p122
      %p124 = scmp.ne.s32.totalorder %s116, %s119
      %p125 = scmp.eq.s32.totalorder %s17, 0
      %p126 = por %p124, %p125
      %p127 = scmp.ne.s32.totalorder %s116, %s119
      %p128 = scmp.eq.s32.totalorder %s22, 1
      %p129 = por %p127, %p128
      %p130 = scmp.ne.s32.totalorder %s119, %s120
      %p131 = scmp.eq.s32.totalorder %s22, 0
      %p132 = por %p130, %p131
      %p133 = scmp.ne.s32.totalorder %s119, %s120
      %p134 = scmp.eq.s32.totalorder %s23, 1
      %p135 = por %p133, %p134
      %p137 = scmp.ne.s32.totalorder %s120, %s136
      %p138 = scmp.eq.s32.totalorder %s23, 0
      %p139 = por %p137, %p138
      %p140 = scmp.le.s32.totalorder 1, %s17
      %p141 = scmp.lt.s32.totalorder %s17, 3
      %p142 = pnand %p140, %p141
      %p143 = pneg %p142
      // Predicated region
      $region9: #{tpu_custom_call.1} parent=5 // pred_check
        _
      $region10: #{tpu_custom_call.1} parent=5 // pred_check_branch
        %145 = sbr.rel (%p142) target = $region12
      $region11: #{tpu_custom_call.1} parent=5 // pred_region
        %s146 = ssub.s32 %s17, 1
        // Predicated region
        $region13: #{tpu_custom_call.1} parent=11 // pred_check
          %p147 = pneg %p64
        $region14: #{tpu_custom_call.1} parent=11 // pred_check_branch
          %149 = sbr.rel (%p147) target = $region16
        $region15: #{tpu_custom_call.1} parent=11 // pred_region
          _
        $region16: #{tpu_custom_call.1} parent=11 // pred_fallthru
          _
        // Predicated region
        $region17: #{tpu_custom_call.1} parent=11 // pred_check
          %p150 = pneg %p85
        $region18: #{tpu_custom_call.1} parent=11 // pred_check_branch
          %152 = sbr.rel (%p150) target = $region20
        $region19: #{tpu_custom_call.1} parent=11 // pred_region
          _
        $region20: #{tpu_custom_call.1} parent=11 // pred_fallthru
          _
        // Predicated region
        $region21: #{tpu_custom_call.1} parent=11 // pred_check
          %p153 = pneg %p106
        $region22: #{tpu_custom_call.1} parent=11 // pred_check_branch
          %155 = sbr.rel (%p153) target = $region24
        $region23: #{tpu_custom_call.1} parent=11 // pred_region
          %s157 = ssub.s32 512, 512
          %158 = vsyncadd [#allocation6], %s157
          %s159 = sshll.u32 [#allocation5], 4
          %s160 = int_to_ptr.vmem [resolvable:$true] %s159
          %165 = dma.hbm_to_vmem [thread:$0]  %s3, 512, %s160, [#allocation6], 256, 256, 16
        $region24: #{tpu_custom_call.1} parent=11 // pred_fallthru
          _
      $region12: #{tpu_custom_call.1} parent=5 // pred_fallthru
        _
      %p166 = scmp.lt.s32.totalorder %s17, 2
      // Predicated region
      $region25: #{tpu_custom_call.1} parent=5 // pred_check
        %p167 = pneg %p166
      $region26: #{tpu_custom_call.1} parent=5 // pred_check_branch
        %169 = sbr.rel (%p167) target = $region28
      $region27: #{tpu_custom_call.1} parent=5 // pred_region
        // Predicated region
        $region29: #{tpu_custom_call.1} parent=27 // pred_check
          %p170 = pneg %p37
        $region30: #{tpu_custom_call.1} parent=27 // pred_check_branch
          %172 = sbr.rel (%p170) target = $region32
        $region31: #{tpu_custom_call.1} parent=27 // pred_region
          %s173 = sand.u32 %s27, 1
          %s174 = scalar_lea.sflag [#allocation3], %s173
          %s175 = sand.u32 %s27, 1
          %s176 = smul.addr %s175, 8
          %s177 = scalar_lea.vmem [#allocation2], %s176
          %s179 = ssub.s32 128, 128
          %180 = vsyncadd %s174, %s179
          %s181 = smul.addr %s17, 2
          %s182 = smul.addr %s181, 64
          %s183 = scalar_lea.hbm %s0, %s182
          %s185 = sshll.u32 %s177, 4
          %s186 = int_to_ptr.vmem [resolvable:$true] %s185
          %188 = dma.hbm_to_vmem [thread:$0]  %s183, 128, %s186, %s174
        $region32: #{tpu_custom_call.1} parent=27 // pred_fallthru
          _
      $region28: #{tpu_custom_call.1} parent=5 // pred_fallthru
        _
      %p189 = scmp.le.s32.totalorder 1, %s17
      %p190 = scmp.lt.s32.totalorder %s17, 3
      %p191 = pnand %p189, %p190
      %p192 = pneg %p191
      // Predicated region
      $region33: #{tpu_custom_call.1} parent=5 // pred_check
        _
      $region34: #{tpu_custom_call.1} parent=5 // pred_check_branch
        %194 = sbr.rel (%p191) target = $region36
      $region35: #{tpu_custom_call.1} parent=5 // pred_region
        %s195 = ssub.s32 %s17, 1
        %s196 = sand.u32 %s30, 1
        %s197 = scalar_lea.sflag [#allocation3], %s196
        %s198 = sand.u32 %s30, 1
        %s199 = smul.addr %s198, 8
        %s200 = scalar_lea.vmem [#allocation2], %s199
        // Predicated region
        $region37: #{tpu_custom_call.1} parent=35 // pred_check
          %p201 = pneg %p43
        $region38: #{tpu_custom_call.1} parent=35 // pred_check_branch
          %203 = sbr.rel (%p201) target = $region40
        $region39: #{tpu_custom_call.1} parent=35 // pred_region
          %204 = dma.done %s197, 128
        $region40: #{tpu_custom_call.1} parent=35 // pred_fallthru
          _
        // Predicated region
        $region41: #{tpu_custom_call.1} parent=35 // pred_check
          %p205 = pneg %p106
        $region42: #{tpu_custom_call.1} parent=35 // pred_check_branch
          %207 = sbr.rel (%p205) target = $region44
        $region43: #{tpu_custom_call.1} parent=35 // pred_region
          %208 = dma.done [#allocation6], 512
        $region44: #{tpu_custom_call.1} parent=35 // pred_fallthru
          _
        %s209 = sand.u32 %s30, 1
        %s210 = scalar_lea.sflag [#allocation3], %s209
        %s211 = sand.u32 %s30, 1
        %s212 = smul.addr %s211, 8
        %s213 = scalar_lea.vmem [#allocation2], %s212
        %p214 = pneg %p43
        %p215 = pneg %p40
        %p216 = pneg %p64
        %p217 = pneg %p61
        %p218 = pneg %p85
        %p219 = pneg %p82
        %p220 = pneg %p106
        %p221 = pneg %p103
        %p222 = pneg %p132
        %p223 = pneg %p129
        %s224 = sand.u32 %s119, 1
        %s225 = scalar_lea.sflag [#allocation4], %s224
        %s226 = sand.u32 %s119, 1
        %s227 = smul.addr %s226, 16
        %s228 = scalar_lea.vmem [#allocation7], %s227
        %v229 = vld [vmem:[%s1] sm:$0xff]
        %v230 = vld [vmem:[#allocation5] sm:$0xff]
        %v231 = vld [vmem:[#allocation5 + $0x8] sm:$0xff]
        %v232 = vld [vmem:[#allocation5 + $0x10] sm:$0x1]
        %v233 = vld [vmem:[#allocation5 + $0x18] sm:$0x1]
        %v234 = vld [vmem:[%s2] sm:$0xff]
        %v235 = vld [vmem:[%s200] sm:$0xff]
        %v237 = vcombine.high %v235, %v235
        %vm239 = vcmask 1043456
        %v240 = vsel %vm239, %v235, 0.0
        %v241 = vsel %vm239, %v237, 0.0
        %242 = vrot.lane.b32.xlu0 %v240, 17
        %v243 = vpop.permute.xlu0 %242
        %244 = vrot.lane.b32.xlu0 %v241, 17
        %v245 = vpop.permute.xlu0 %244
        %v246 = vlaneseq
        %v247 = vand.u32 %v246, 127
        %vm248 = vcmp.lt.s32.totalorder %v247, 17
        %v249 = vsel %vm248, %v243, %v245
        %v250 = vsel %vm248, %v245, %v243
        %v251 = vlaneseq
        %v252 = vshrl.u32 %v251, 7
        %v253 = vsub.s32 0, %v252
        %v254 = vrot.slane %v230, %v253
        %v255 = vlaneseq
        %v256 = vshrl.u32 %v255, 7
        %v257 = vsub.s32 0, %v256
        %v258 = vrot.slane %v231, %v257
        %v259 = vmul.f32 %v250, %v254
        %v260 = vmul.f32 %v249, %v258
        %261 = vrot.lane.b32.xlu0 %v240, 16
        %v262 = vpop.permute.xlu0 %261
        %263 = vrot.lane.b32.xlu0 %v241, 16
        %v264 = vpop.permute.xlu0 %263
        %vm265 = vcmp.lt.s32.totalorder %v247, 16
        %v266 = vsel %vm265, %v262, %v264
        %v267 = vsel %vm265, %v264, %v262
        %v268 = vlaneseq
        %v269 = vshrl.u32 %v268, 7
        %v270 = vsub.s32 1, %v269
        %v271 = vrot.slane %v230, %v270
        %v272 = vlaneseq
        %v273 = vshrl.u32 %v272, 7
        %v274 = vsub.s32 1, %v273
        %v275 = vrot.slane %v231, %v274
        %v276 = vmul.f32 %v267, %v271
        %v277 = vmul.f32 %v266, %v275
        %278 = vrot.lane.b32.xlu0 %v240, 15
        %v279 = vpop.permute.xlu0 %278
        %280 = vrot.lane.b32.xlu0 %v241, 15
        %v281 = vpop.permute.xlu0 %280
        %vm282 = vcmp.lt.s32.totalorder %v247, 15
        %v283 = vsel %vm282, %v279, %v281
        %v284 = vsel %vm282, %v281, %v279
        %v285 = vlaneseq
        %v286 = vshrl.u32 %v285, 7
        %v287 = vsub.s32 2, %v286
        %v288 = vrot.slane %v230, %v287
        %v289 = vlaneseq
        %v290 = vshrl.u32 %v289, 7
        %v291 = vsub.s32 2, %v290
        %v292 = vrot.slane %v231, %v291
        %v293 = vmul.f32 %v284, %v288
        %v294 = vmul.f32 %v283, %v292
        %295 = vrot.lane.b32.xlu0 %v240, 1
        %v296 = vpop.permute.xlu0 %295
        %297 = vrot.lane.b32.xlu0 %v241, 1
        %v298 = vpop.permute.xlu0 %297
        %vm299 = vcmp.lt.s32.totalorder %v247, 1
        %v300 = vsel %vm299, %v296, %v298
        %v301 = vsel %vm299, %v298, %v296
        %v302 = vlaneseq
        %v303 = vshrl.u32 %v302, 7
        %v304 = vsub.s32 3, %v303
        %v305 = vrot.slane %v230, %v304
        %v306 = vlaneseq
        %v307 = vshrl.u32 %v306, 7
        %v308 = vsub.s32 3, %v307
        %v309 = vrot.slane %v231, %v308
        %v310 = vmul.f32 %v301, %v305
        %v311 = vmul.f32 %v300, %v309
        %312 = vrot.lane.b32.xlu0 %v240, 127
        %v313 = vpop.permute.xlu0 %312
        %314 = vrot.lane.b32.xlu0 %v241, 127
        %v315 = vpop.permute.xlu0 %314
        %vm316 = vcmp.lt.s32.totalorder %v247, 127
        %v317 = vsel %vm316, %v313, %v315
        %v318 = vsel %vm316, %v315, %v313
        %v319 = vlaneseq
        %v320 = vshrl.u32 %v319, 7
        %v321 = vsub.s32 5, %v320
        %v322 = vrot.slane %v230, %v321
        %v323 = vlaneseq
        %v324 = vshrl.u32 %v323, 7
        %v325 = vsub.s32 5, %v324
        %v326 = vrot.slane %v231, %v325
        %v327 = vmul.f32 %v317, %v322
        %v328 = vmul.f32 %v318, %v326
        %329 = vrot.lane.b32.xlu0 %v240, 113
        %v330 = vpop.permute.xlu0 %329
        %331 = vrot.lane.b32.xlu0 %v241, 113
        %v332 = vpop.permute.xlu0 %331
        %vm333 = vcmp.lt.s32.totalorder %v247, 113
        %v334 = vsel %vm333, %v330, %v332
        %v335 = vsel %vm333, %v332, %v330
        %v336 = vlaneseq
        %v337 = vshrl.u32 %v336, 7
        %v338 = vsub.s32 6, %v337
        %v339 = vrot.slane %v230, %v338
        %v340 = vlaneseq
        %v341 = vshrl.u32 %v340, 7
        %v342 = vsub.s32 6, %v341
        %v343 = vrot.slane %v231, %v342
        %v344 = vmul.f32 %v334, %v339
        %v345 = vmul.f32 %v335, %v343
        %346 = vrot.lane.b32.xlu0 %v240, 112
        %v347 = vpop.permute.xlu0 %346
        %348 = vrot.lane.b32.xlu0 %v241, 112
        %v349 = vpop.permute.xlu0 %348
        %vm350 = vcmp.lt.s32.totalorder %v247, 112
        %v351 = vsel %vm350, %v347, %v349
        %v352 = vsel %vm350, %v349, %v347
        %v353 = vlaneseq
        %v354 = vshrl.u32 %v353, 7
        %v355 = vsub.s32 7, %v354
        %v356 = vrot.slane %v230, %v355
        %v357 = vlaneseq
        %v358 = vshrl.u32 %v357, 7
        %v359 = vsub.s32 7, %v358
        %v360 = vrot.slane %v231, %v359
        %v361 = vmul.f32 %v351, %v356
        %v362 = vmul.f32 %v352, %v360
        %363 = vrot.lane.b32.xlu0 %v240, 111
        %v364 = vpop.permute.xlu0 %363
        %365 = vrot.lane.b32.xlu0 %v241, 111
        %v366 = vpop.permute.xlu0 %365
        %vm367 = vcmp.lt.s32.totalorder %v247, 111
        %v368 = vsel %vm367, %v364, %v366
        %v369 = vsel %vm367, %v366, %v364
        %v370 = vlaneseq
        %v371 = vshrl.u32 %v370, 7
        %v372 = vsub.s32 0, %v371
        %v373 = vrot.slane %v232, %v372
        %v374 = vlaneseq
        %v375 = vshrl.u32 %v374, 7
        %v376 = vsub.s32 0, %v375
        %v377 = vrot.slane %v233, %v376
        %v378 = vmul.f32 %v368, %v373
        %v379 = vmul.f32 %v369, %v377
        %381 = vset.pattern.permute.xlu0 0
        %382 = vperm.xlu0 %381, %v234
        %v383 = vpop.permute.xlu0 %382
        %vm385 = vcmask 588800
        %v387 = vsel %vm385, %v229, 0
        %389 = vmatprep.subr.mxu0 %v260
        %390 = vmatpush1.msra.mxu0 %v259
        %391 = vmatprep.subr.mxu0 %v277
        %392 = vmatpush1.msra.mxu0 %v276
        %393 = vmatprep.subr.mxu0 %v294
        %394 = vmatpush1.msra.mxu0 %v293
        %395 = vmatprep.subr.mxu0 %v311
        %396 = vmatpush1.msra.mxu0 %v310
        %397 = vmatprep.subr.mxu0 %v241
        %398 = vmatpush1.msra.mxu0 %v240
        %399 = vmatprep.subr.mxu0 %v328
        %400 = vmatpush1.msra.mxu0 %v327
        %401 = vmatprep.subr.mxu0 %v345
        %402 = vmatpush1.msra.mxu0 %v344
        %403 = vmatprep.subr.mxu0 %v362
        %404 = vmatpush1.msra.mxu0 %v361
        %405 = vmatprep.subr.mxu0 %v379
        %406 = vmatpush1.msra.mxu0 %v378
        %407 = vmatprep.subr.mxu0 0.0
        %408 = vmatpush1.msra.mxu0 0.0
        %409 = vmatprep.subr.mxu0 0.0
        %410 = vmatpush1.msra.mxu0 0.0
        %411 = vmatprep.subr.mxu0 0.0
        %412 = vmatpush1.msra.mxu0 0.0
        %413 = vmatprep.subr.mxu0 0.0
        %414 = vmatpush1.msra.mxu0 0.0
        %415 = vmatprep.subr.mxu0 0.0
        %416 = vmatpush1.msra.mxu0 0.0
        %417 = vmatprep.subr.mxu0 0.0
        %418 = vmatpush1.msra.mxu0 0.0
        %419 = vmatprep.subr.mxu0 0.0
        %420 = vmatpush1.msra.mxu0 0.0
        %421 = vmatprep.subr.mxu0 0.0
        %422 = vmatpush1.msra.mxu0 0.0
        %423 = vmatprep.subr.mxu0 0.0
        %424 = vmatpush1.msra.mxu0 0.0
        %425 = vmatprep.subr.mxu0 0.0
        %426 = vmatpush1.msra.mxu0 0.0
        %427 = vmatprep.subr.mxu0 0.0
        %428 = vmatpush1.msra.mxu0 0.0
        %429 = vmatprep.subr.mxu0 0.0
        %430 = vmatpush1.msra.mxu0 0.0
        %431 = vmatprep.subr.mxu0 0.0
        %432 = vmatpush1.msra.mxu0 0.0
        %433 = vmatprep.subr.mxu0 0.0
        %434 = vmatpush1.msra.mxu0 0.0
        %435 = vmatprep.subr.mxu0 0.0
        %436 = vmatpush1.msra.mxu0 0.0
        %437 = vmatprep.subr.mxu0 0.0
        %438 = vmatpush1.msra.mxu0 0.0
        %439 = vmatprep.subr.mxu0 0.0
        %440 = vmatpush1.msra.mxu0 0.0
        %441 = vmatprep.subr.mxu0 0.0
        %442 = vmatpush1.msra.mxu0 0.0
        %443 = vmatprep.subr.mxu0 0.0
        %444 = vmatpush1.msra.mxu0 0.0
        %445 = vmatprep.subr.mxu0 0.0
        %446 = vmatpush1.msra.mxu0 0.0
        %447 = vmatprep.subr.mxu0 0.0
        %448 = vmatpush1.msra.mxu0 0.0
        %449 = vmatprep.subr.mxu0 0.0
        %450 = vmatpush1.msra.mxu0 0.0
        %451 = vmatprep.subr.mxu0 0.0
        %452 = vmatpush1.msra.mxu0 0.0
        %453 = vmatprep.mubr.f32.mxu0 0.0
        %454 = vmatmul.mubr.f32.gmra.mrb[0].mxu0 %v387
        %v455 = vpop.f32.mrb[0].mxu0
        %v456 = vadd.f32 %v383, %v455
        %v457 = vpop.f32.mrb[0].mxu0
        %v458 = vadd.f32 %v383, %v457
        %459 = vdwg.mxu0
        %v460 = vmax.f32 %v456, 0.0
        %v461 = vmax.f32 %v458, 0.0
        %462 = vst [vmem:[%s228] sm:$0xff] %v460
        %463 = vst [vmem:[%s228 + $0x8] sm:$0xff] %v461
        %s464 = sand.u32 %s119, 1
        %s465 = scalar_lea.sflag [#allocation4], %s464
        %s466 = sand.u32 %s119, 1
        %s467 = smul.addr %s466, 16
        %s468 = scalar_lea.vmem [#allocation7], %s467
        // Predicated region
        $region45: #{tpu_custom_call.1} parent=35 // pred_check
          %p469 = pneg %p129
        $region46: #{tpu_custom_call.1} parent=35 // pred_check_branch
          %471 = sbr.rel (%p469) target = $region48
        $region47: #{tpu_custom_call.1} parent=35 // pred_region
          %s473 = ssub.s32 256, 256
          %474 = vsyncadd %s465, %s473
          %s475 = smul.addr %s22, 2
          %s476 = smul.addr %s475, 128
          %s477 = scalar_lea.hbm %s4, %s476
          %s479 = sshll.u32 %s468, 4
          %s480 = int_to_ptr.vmem [resolvable:$true] %s479
          %482 = dma.vmem_to_hbm [thread:$0]  %s480, 256, %s477, %s465
        $region48: #{tpu_custom_call.1} parent=35 // pred_fallthru
          _
      $region36: #{tpu_custom_call.1} parent=5 // pred_fallthru
        _
      %p483 = scmp.le.s32.totalorder 2, %s17
      // Predicated region
      $region49: #{tpu_custom_call.1} parent=5 // pred_check
        %p484 = pneg %p483
      $region50: #{tpu_custom_call.1} parent=5 // pred_check_branch
        %486 = sbr.rel (%p484) target = $region52
      $region51: #{tpu_custom_call.1} parent=5 // pred_region
        %s487 = ssub.s32 %s17, 2
        // Predicated region
        $region53: #{tpu_custom_call.1} parent=51 // pred_check
          %p488 = pneg %p135
        $region54: #{tpu_custom_call.1} parent=51 // pred_check_branch
          %490 = sbr.rel (%p488) target = $region56
        $region55: #{tpu_custom_call.1} parent=51 // pred_region
          %s491 = sand.u32 %s120, 1
          %s492 = scalar_lea.sflag [#allocation4], %s491
          %s493 = sand.u32 %s120, 1
          %s494 = smul.addr %s493, 16
          %s495 = scalar_lea.vmem [#allocation7], %s494
          %496 = dma.done %s492, 256
        $region56: #{tpu_custom_call.1} parent=51 // pred_fallthru
          _
      $region52: #{tpu_custom_call.1} parent=5 // pred_fallthru
        _
    $region6: #{tpu_custom_call.1} parent=1 // loop_footer
      %s21 = sadd.s32 1, %s17
    $region7: #{tpu_custom_call.1} parent=1 // loop_footer_branch
      %16 = sbr.rel target = $region3
    $region8: #{tpu_custom_call.1} parent=1 // loop_exit
      _
    %497 = vsyncpa [#allocation3], 1
    %s498 = scalar_lea.sflag [#allocation3], 1
    %499 = vsyncpa %s498, 1
    %500 = vsyncpa [#allocation6], 1
    %501 = vsyncpa [#allocation4], 1
    %s502 = scalar_lea.sflag [#allocation4], 1
    %503 = vsyncpa %s502, 1

</llo_original>
